<compile_context>
chip_gen: v7x
topology: tpu7x:2x2x1
jax: 0.10.0
libtpu: 0.0.40
codegen_flags: <defaults>
</compile_context>

<pallas_src>
import jax
import jax.numpy as jnp
from jax.experimental import pallas as pl
from jax.experimental.pallas import tpu as pltpu


def _groupsort2_kernel(a_ref, b_ref, mx_ref, mn_ref):
    a = a_ref[...]
    b = b_ref[...]
    mx_ref[...] = jnp.maximum(a, b)
    mn_ref[...] = jnp.minimum(a, b)


def _round_up(x: int, m: int) -> int:
    return (x + m - 1) // m * m


def group_sort(x_nchw: jax.Array, group_size: int = 2) -> jax.Array:
    """GroupSort along axis=1 for NCHW inputs. Only group_size=2 is kernelized."""
    B, C, H, W = x_nchw.shape
    assert C % group_size == 0
    if group_size != 2:
        # TODO(synk): general group_size needs an in-kernel bitonic sort over the
        # group axis; only the module's default (group_size=2) path is implemented.
        raise NotImplementedError("Only group_size=2 is implemented as a Pallas kernel")

    half = C // 2
    rows, cols = B * half, H * W
    dtype = x_nchw.dtype
    bpe = jnp.dtype(dtype).itemsize

    # Two lane-dense slabs: paired channels live at the same row of a and b.
    a = x_nchw[:, :half].reshape(rows, cols)
    b = x_nchw[:, half:].reshape(rows, cols)

    # Tile sizing: aim for ~1 MiB data blocks.  2 inputs + 2 outputs, each
    # double-buffered -> ~8x block bytes of VMEM, safely under the scoped
    # defaults on v5e (16 MiB), v6e (32 MiB) and v7x (32 MiB / 64 MiB physical).
    TARGET = 1 << 20  # bytes per block
    cols_p = _round_up(cols, 128)
    if cols_p * 8 * bpe <= TARGET:
        TC = cols_p                                   # full (padded) lane width
    else:
        TC = max(128, (TARGET // (8 * bpe)) // 128 * 128)
        cols_p = _round_up(cols_p, TC)
    TR = max(8, min(_round_up(rows, 8), (TARGET // (TC * bpe)) // 8 * 8))
    rows_p = _round_up(rows, TR)

    pad_r, pad_c = rows_p - rows, cols_p - cols
    if pad_r or pad_c:
        a = jnp.pad(a, ((0, pad_r), (0, pad_c)))
        b = jnp.pad(b, ((0, pad_r), (0, pad_c)))

    grid = (rows_p // TR, cols_p // TC)
    spec = pl.BlockSpec((TR, TC), lambda i, j: (i, j))

    mx, mn = pl.pallas_call(
        _groupsort2_kernel,
        out_shape=(
            jax.ShapeDtypeStruct((rows_p, cols_p), dtype),
            jax.ShapeDtypeStruct((rows_p, cols_p), dtype),
        ),
        grid_spec=pltpu.PrefetchScalarGridSpec(
            num_scalar_prefetch=0,
            grid=grid,
            in_specs=[spec, spec],
            out_specs=[spec, spec],
        ),
        compiler_params=pltpu.CompilerParams(
            dimension_semantics=("parallel", "parallel"),
        ),
    )(a, b)

    if pad_r or pad_c:
        mx = mx[:rows, :cols]
        mn = mn[:rows, :cols]

    mx = mx.reshape(B, half, H, W)
    mn = mn.reshape(B, half, H, W)
    return jnp.concatenate([mx, mn], axis=1)


if __name__ == "__main__":
    B, C, H, W = 2, 4, 16, 16
    key = jax.random.PRNGKey(0)
    x = jax.random.normal(key, (B, C, H, W), dtype=jnp.float32)

    out = group_sort(x, group_size=2)
    out = jax.block_until_ready(out)

    # Reference (plain JAX), mirroring the PyTorch group_size==2 path exactly.
    a_ref, b_ref = x[:, : C // 2], x[:, C // 2 :]
    ref = jnp.concatenate([jnp.maximum(a_ref, b_ref), jnp.minimum(a_ref, b_ref)], axis=1)

    assert out.shape == (B, C, H, W)
    assert jnp.array_equal(out, ref), "mismatch vs reference"

    print("KERNEL_OK")
</pallas_src>

<mosaic_0001>
module attributes {stable_mosaic.version = 11 : i64} {
  func.func @_groupsort2_kernel(%arg0: i32, %arg1: i32, %arg2: memref<8x256xf32, #tpu.memory_space<vmem>>, %arg3: memref<8x256xf32, #tpu.memory_space<vmem>>, %arg4: memref<8x256xf32, #tpu.memory_space<vmem>>, %arg5: memref<8x256xf32, #tpu.memory_space<vmem>>) attributes {dimension_semantics = [#tpu.dimension_semantics<parallel>, #tpu.dimension_semantics<parallel>], iteration_bounds = array<i64: 1, 1>, scalar_prefetch = 0 : i64, scratch_operands = 0 : i64, tpu.core_type = #tpu.core_type<tc>, window_params = [{transform_indices = @transform_0, window_bounds = array<i64: 8, 256>}, {transform_indices = @transform_1, window_bounds = array<i64: 8, 256>}, {transform_indices = @transform_2, window_bounds = array<i64: 8, 256>}, {transform_indices = @transform_3, window_bounds = array<i64: 8, 256>}]} {
    %c0 = arith.constant 0 : index
    %c0_0 = arith.constant 0 : index
    %0 = vector.load %arg2[%c0, %c0_0] : memref<8x256xf32, #tpu.memory_space<vmem>>, vector<8x256xf32>
    %c0_1 = arith.constant 0 : index
    %c0_2 = arith.constant 0 : index
    %1 = vector.load %arg3[%c0_1, %c0_2] : memref<8x256xf32, #tpu.memory_space<vmem>>, vector<8x256xf32>
    %2 = arith.maximumf %0, %1 : vector<8x256xf32>
    %c0_3 = arith.constant 0 : index
    %c0_4 = arith.constant 0 : index
    %3 = vector.load %arg4[%c0_3, %c0_4] : memref<8x256xf32, #tpu.memory_space<vmem>>, vector<8x256xf32>
    tpu.vector_store %arg4[%c0_3, %c0_4], %2 {strides = array<i32>} : memref<8x256xf32, #tpu.memory_space<vmem>>, vector<8x256xf32>,
    %4 = arith.minimumf %0, %1 : vector<8x256xf32>
    %c0_5 = arith.constant 0 : index
    %c0_6 = arith.constant 0 : index
    %5 = vector.load %arg5[%c0_5, %c0_6] : memref<8x256xf32, #tpu.memory_space<vmem>>, vector<8x256xf32>
    tpu.vector_store %arg5[%c0_5, %c0_6], %4 {strides = array<i32>} : memref<8x256xf32, #tpu.memory_space<vmem>>, vector<8x256xf32>,
    return
  }
  func.func @transform_0(%arg0: i32, %arg1: i32) -> (i32, i32) {
    %c0_i32 = arith.constant 0 : i32
    return %arg0, %arg1 : i32, i32
  }
  func.func @transform_1(%arg0: i32, %arg1: i32) -> (i32, i32) {
    %c0_i32 = arith.constant 0 : i32
    return %arg0, %arg1 : i32, i32
  }
  func.func @transform_2(%arg0: i32, %arg1: i32) -> (i32, i32) {
    %c0_i32 = arith.constant 0 : i32
    return %arg0, %arg1 : i32, i32
  }
  func.func @transform_3(%arg0: i32, %arg1: i32) -> (i32, i32) {
    %c0_i32 = arith.constant 0 : i32
    return %arg0, %arg1 : i32, i32
  }
}

</mosaic_0001>

<llo_original>
// kernel: tpu_custom_call.1
$region0: #{tpu_custom_call.1}
  #allocation0 [shape = 'u32[]', space=smem, size = 0x4, offset = 0x4, fixed_abs, tag = 'smem constant byte address 0x4 - core index']
  #allocation1 [shape = 'u32[144,128]{1,0:T(1,128)}', space=vmem, size = 0x12000, scoped, tag = 'internal scratch']
  %s0 = inlined_call_operand.hbm [shape: f32[8,256], index: 0, kind: input, shape index: {}]
  %s1 = inlined_call_operand.hbm [shape: f32[8,256], index: 1, kind: input, shape index: {}]
  %s2 = inlined_call_operand.hbm [shape: f32[8,256], index: 2, kind: output, shape index: {0}]
  %s3 = inlined_call_operand.hbm [shape: f32[8,256], index: 3, kind: output, shape index: {1}]
  %4 = xla_tuple %s2, %s3
  %s5 = sld [smem:[#allocation0]]
  $region34: #{tpu_custom_call.1} parent=0
    _
  %s7 = ssub.s32 1, %s5
  %s8 = scalar_select 0, %s7, %s5
  $region1: #{tpu_custom_call.1} parent=0
    #allocation2 [shape = 'u8[8192]{0}', space=vmem, size = 0x2000, scoped, tag = 'input window, operand 0, single buffered']
    #allocation3 [shape = 's32[1]{0}', space=sflag, size = 0x4, scoped, tag = 'scoped memory for tpu_custom_call.1']
    #allocation4 [shape = 's32[1]{0}', space=sflag, size = 0x4, scoped, tag = 'scoped memory for tpu_custom_call.1']
    #allocation5 [shape = 'u8[8192]{0}', space=vmem, size = 0x2000, scoped, tag = 'input window, operand 1, single buffered']
    #allocation6 [shape = 's32[1]{0}', space=sflag, size = 0x4, scoped, tag = 'scoped memory for tpu_custom_call.1']
    #allocation7 [shape = 'u8[8192]{0}', space=vmem, size = 0x2000, scoped, tag = 'output window, operand 0, single buffered']
    #allocation8 [shape = 'u8[8192]{0}', space=vmem, size = 0x2000, scoped, tag = 'output window, operand 1, single buffered']
    #allocation9 [shape = 's32[1]{0}', space=sflag, size = 0x4, scoped, tag = 'scoped memory for tpu_custom_call.1']
    %9 = vsyncpa [#allocation3], 0
    %10 = vsyncpa [#allocation6], 0
    %11 = vsyncpa [#allocation4], 0
    %12 = vsyncpa [#allocation9], 0
    // Predicated region
    $region2: #{tpu_custom_call.1} parent=1 // pred_check
      _
    $region3: #{tpu_custom_call.1} parent=1 // pred_check_branch
      %14 = sbr.rel (0) target = $region5
    $region4: #{tpu_custom_call.1} parent=1 // pred_region
      %s16 = ssub.s32 256, 256
      %17 = vsyncadd [#allocation3], %s16
      %s19 = sshll.u32 [#allocation2], 4
      %s20 = int_to_ptr.vmem [resolvable:$true] %s19
      %22 = dma.hbm_to_vmem [thread:$0]  %s0, 256, %s20, [#allocation3]
    $region5: #{tpu_custom_call.1} parent=1 // pred_fallthru
      _
    // Predicated region
    $region6: #{tpu_custom_call.1} parent=1 // pred_check
      _
    $region7: #{tpu_custom_call.1} parent=1 // pred_check_branch
      %24 = sbr.rel (0) target = $region9
    $region8: #{tpu_custom_call.1} parent=1 // pred_region
      %s26 = ssub.s32 256, 256
      %27 = vsyncadd [#allocation6], %s26
      %s29 = sshll.u32 [#allocation5], 4
      %s30 = int_to_ptr.vmem [resolvable:$true] %s29
      %32 = dma.hbm_to_vmem [thread:$0]  %s1, 256, %s30, [#allocation6]
    $region9: #{tpu_custom_call.1} parent=1 // pred_fallthru
      _
    // Predicated region
    $region10: #{tpu_custom_call.1} parent=1 // pred_check
      _
    $region11: #{tpu_custom_call.1} parent=1 // pred_check_branch
      %34 = sbr.rel (0) target = $region13
    $region12: #{tpu_custom_call.1} parent=1 // pred_region
      %35 = dma.done [#allocation3], 256
    $region13: #{tpu_custom_call.1} parent=1 // pred_fallthru
      _
    // Predicated region
    $region14: #{tpu_custom_call.1} parent=1 // pred_check
      _
    $region15: #{tpu_custom_call.1} parent=1 // pred_check_branch
      %37 = sbr.rel (0) target = $region17
    $region16: #{tpu_custom_call.1} parent=1 // pred_region
      %38 = dma.done [#allocation6], 256
    $region17: #{tpu_custom_call.1} parent=1 // pred_fallthru
      _
    %v39 = vld [vmem:[#allocation2] sm:$0xff]
    %v40 = vld [vmem:[#allocation2 + $0x8] sm:$0xff]
    %v41 = vld [vmem:[#allocation5] sm:$0xff]
    %v42 = vld [vmem:[#allocation5 + $0x8] sm:$0xff]
    %v43 = vmax.f32 %v39, %v41
    %v44 = vmax.f32 %v40, %v42
    %45 = vst [vmem:[#allocation7] sm:$0xff] %v43
    %46 = vst [vmem:[#allocation7 + $0x8] sm:$0xff] %v44
    %v47 = vmin.f32 %v39, %v41
    %v48 = vmin.f32 %v40, %v42
    %49 = vst [vmem:[#allocation8] sm:$0xff] %v47
    %50 = vst [vmem:[#allocation8 + $0x8] sm:$0xff] %v48
    // Predicated region
    $region18: #{tpu_custom_call.1} parent=1 // pred_check
      _
    $region19: #{tpu_custom_call.1} parent=1 // pred_check_branch
      %52 = sbr.rel (0) target = $region21
    $region20: #{tpu_custom_call.1} parent=1 // pred_region
      %s54 = ssub.s32 256, 256
      %55 = vsyncadd [#allocation4], %s54
      %s57 = sshll.u32 [#allocation7], 4
      %s58 = int_to_ptr.vmem [resolvable:$true] %s57
      %60 = dma.vmem_to_hbm [thread:$0]  %s58, 256, %s2, [#allocation4]
    $region21: #{tpu_custom_call.1} parent=1 // pred_fallthru
      _
    // Predicated region
    $region22: #{tpu_custom_call.1} parent=1 // pred_check
      _
    $region23: #{tpu_custom_call.1} parent=1 // pred_check_branch
      %62 = sbr.rel (0) target = $region25
    $region24: #{tpu_custom_call.1} parent=1 // pred_region
      %s64 = ssub.s32 256, 256
      %65 = vsyncadd [#allocation9], %s64
      %s67 = sshll.u32 [#allocation8], 4
      %s68 = int_to_ptr.vmem [resolvable:$true] %s67
      %70 = dma.vmem_to_hbm [thread:$0]  %s68, 256, %s3, [#allocation9]
    $region25: #{tpu_custom_call.1} parent=1 // pred_fallthru
      _
    // Predicated region
    $region26: #{tpu_custom_call.1} parent=1 // pred_check
      _
    $region27: #{tpu_custom_call.1} parent=1 // pred_check_branch
      %72 = sbr.rel (0) target = $region29
    $region28: #{tpu_custom_call.1} parent=1 // pred_region
      %73 = dma.done [#allocation4], 256
    $region29: #{tpu_custom_call.1} parent=1 // pred_fallthru
      _
    // Predicated region
    $region30: #{tpu_custom_call.1} parent=1 // pred_check
      _
    $region31: #{tpu_custom_call.1} parent=1 // pred_check_branch
      %75 = sbr.rel (0) target = $region33
    $region32: #{tpu_custom_call.1} parent=1 // pred_region
      %76 = dma.done [#allocation9], 256
    $region33: #{tpu_custom_call.1} parent=1 // pred_fallthru
      _
    %77 = vsyncpa [#allocation3], 1
    %78 = vsyncpa [#allocation6], 1
    %79 = vsyncpa [#allocation4], 1
    %80 = vsyncpa [#allocation9], 1

</llo_original>
